<compile_context>
chip_gen: v7x
topology: tpu7x:2x2x1
jax: 0.10.0
libtpu: 0.0.40
codegen_flags: <defaults>
</compile_context>

<pallas_src>
import functools

import jax
import jax.numpy as jnp
from jax.experimental import pallas as pl
from jax.experimental.pallas import tpu as pltpu

_LANES = 128     # vreg lane width (minor dim)
_SUBLANES = 8    # vreg sublane height
# 4096 rows x 128 lanes x 4 B = 2 MiB per input per pipeline buffer.
# 2 inputs x 2 buffers = 8 MiB  -> safe under every scoped-VMEM default.
_MAX_BLOCK_ROWS = 4096
_NSTATS = 6      # sum_x, sum_y, sum_xx, sum_yy, sum_xy, sum_sqdiff


def _round_up(v, m):
    return (v + m - 1) // m * m


def _round_down(v, m):
    return (v // m) * m


def _detect_num_cores():
    """Returns 2 only on TPU v7x (two TensorCores per chip); 1 otherwise."""
    try:
        dev = jax.devices()[0]
        if getattr(dev, "platform", "") != "tpu":
            return 1
        kind = str(getattr(dev, "device_kind", "")).lower()
        if "v7" in kind:
            return 2
    except Exception:  # defensive: never let detection break the kernel
        return 1
    return 1


def _fused_group_sums(x_ref, y_ref, start_row, num_groups, carry):
    """Streams `num_groups` (8,128) vreg pairs from the input VMEM buffers.

    Each x/y pair is read exactly once and all six running sums are updated
    in registers (loop carry); nothing is written back to VMEM here.
    """
    if num_groups <= 0:
        return carry

    def body(j, c):
        sx, sy, sxx, syy, sxy, sdd = c
        r = pl.multiple_of(start_row + j * _SUBLANES, _SUBLANES)
        xv = x_ref[pl.ds(r, _SUBLANES), :].astype(jnp.float32)
        yv = y_ref[pl.ds(r, _SUBLANES), :].astype(jnp.float32)
        d = xv - yv
        return (sx + xv, sy + yv, sxx + xv * xv, syy + yv * yv,
                sxy + xv * yv, sdd + d * d)

    return jax.lax.fori_loop(0, num_groups, body, carry,
                             unroll=min(8, num_groups))


def _block_sums(x_ref, y_ref, *, full_rows, partial_rows):
    """Six (8,128) partial sums over `full_rows + partial_rows` valid rows."""
    zero = jnp.zeros((_SUBLANES, _LANES), jnp.float32)
    carry = (zero,) * _NSTATS
    carry = _fused_group_sums(x_ref, y_ref, 0, full_rows // _SUBLANES, carry)
    if partial_rows:
        # Only the ragged last group of the last block pays for the mask.
        r = full_rows  # multiple of 8; r + 8 <= block_rows by construction
        xv = x_ref[pl.ds(r, _SUBLANES), :].astype(jnp.float32)
        yv = y_ref[pl.ds(r, _SUBLANES), :].astype(jnp.float32)
        valid = (jax.lax.broadcasted_iota(jnp.int32, (_SUBLANES, _LANES), 0)
                 < partial_rows)
        xv = jnp.where(valid, xv, 0.0)
        yv = jnp.where(valid, yv, 0.0)
        d = xv - yv
        sx, sy, sxx, syy, sxy, sdd = carry
        carry = (sx + xv, sy + yv, sxx + xv * xv, syy + yv * yv,
                 sxy + xv * yv, sdd + d * d)
    return carry


def _stats_kernel(x_ref, y_ref, acc_ref, *, num_cores, steps, total_blocks,
                  block_rows, tail_valid):
    """Accumulates six (8,128) vector partial sums into the resident output.

    acc_ref block: (1, _NSTATS, 8, 128) f32, revisited across the inner
    ("arbitrary") grid axis -> per-core accumulator.
    """
    if num_cores > 1:
        c = pl.program_id(0)
        i = pl.program_id(1)
        blk = c * steps + i
    else:
        i = pl.program_id(0)
        blk = i

    @pl.when(i == 0)
    def _init():
        acc_ref[...] = jnp.zeros_like(acc_ref)

    def commit(sums):
        for k, s in enumerate(sums):
            acc_ref[0, k] += s

    ragged_tail = tail_valid != block_rows            # static
    clamped = (num_cores * steps) > total_blocks      # static (2-core only)

    if not ragged_tail and not clamped:
        # Common case: every block is full; zero masking / branching work.
        commit(_block_sums(x_ref, y_ref, full_rows=block_rows, partial_rows=0))
    else:
        last_full = total_blocks - (1 if ragged_tail else 0)

        @pl.when(blk < last_full)
        def _full_block():
            commit(_block_sums(x_ref, y_ref, full_rows=block_rows,
                               partial_rows=0))

        if ragged_tail:
            # Only the true last block pays for the shorter loop + mask.
            # Clamped duplicate steps (blk >= total_blocks) skip both paths.
            @pl.when(blk == total_blocks - 1)
            def _tail_block():
                commit(_block_sums(
                    x_ref, y_ref,
                    full_rows=_round_down(tail_valid, _SUBLANES),
                    partial_rows=tail_valid % _SUBLANES))


def _run_stats_kernel(x2d, y2d):
    """Runs the streaming-reduction kernel over a (rows, 128) view."""
    rows = x2d.shape[0]
    num_cores = _detect_num_cores()
    if num_cores > 1 and rows < num_cores * _SUBLANES:
        num_cores = 1

    if num_cores == 1:
        # block_rows is a multiple of 8 and never exceeds the array.
        block_rows = min(_MAX_BLOCK_ROWS, _round_down(rows, _SUBLANES))
    else:
        block_rows = min(_MAX_BLOCK_ROWS,
                         _round_up(pl.cdiv(rows, num_cores), _SUBLANES))
        block_rows = min(block_rows, _round_down(rows, _SUBLANES))

    total_blocks = pl.cdiv(rows, block_rows)
    steps = pl.cdiv(total_blocks, num_cores)
    tail_valid = rows - (total_blocks - 1) * block_rows  # rows in last block

    kernel = functools.partial(
        _stats_kernel,
        num_cores=num_cores,
        steps=steps,
        total_blocks=total_blocks,
        block_rows=block_rows,
        tail_valid=tail_valid,
    )

    if num_cores == 1:
        grid = (steps,)
        in_index = lambda i: (i, 0)
        out_index = lambda i: (0, 0, 0, 0)
        semantics = ("arbitrary",)
        spec_kwargs = {}
    else:
        grid = (num_cores, steps)
        # min-clamp: the single possible overflow step (odd total_blocks)
        # repeats the previous step's block index on the same core, so
        # Pallas issues NO duplicate DMA; its accumulation is skipped.
        in_index = lambda c, i: (jnp.minimum(c * steps + i, total_blocks - 1), 0)
        out_index = lambda c, i: (c, 0, 0, 0)
        semantics = (getattr(pltpu, "CORE_PARALLEL", "parallel"), "arbitrary")
        # v7x: 3-deep input pipeline (2 inputs x 3 bufs x 2 MiB = 12 MiB).
        spec_kwargs = dict(pipeline_mode=pl.Buffered(3))

    in_specs = [
        pl.BlockSpec((block_rows, _LANES), in_index, **spec_kwargs),
        pl.BlockSpec((block_rows, _LANES), in_index, **spec_kwargs),
    ]

    partials = pl.pallas_call(
        kernel,
        out_shape=jax.ShapeDtypeStruct(
            (num_cores, _NSTATS, _SUBLANES, _LANES), jnp.float32),
        grid=grid,
        in_specs=in_specs,
        out_specs=pl.BlockSpec((1, _NSTATS, _SUBLANES, _LANES), out_index),
        compiler_params=pltpu.CompilerParams(dimension_semantics=semantics),
    )(x2d, y2d)

    # Tiny final reduction: (num_cores, 6, 8, 128) -> 6 scalars.
    return jnp.sum(partials, axis=(0, 2, 3))


def _tail_stats(x, y):
    """Plain-jnp partial sums for a tiny (<1024-element) remainder."""
    x = x.astype(jnp.float32)
    y = y.astype(jnp.float32)
    d = x - y
    return jnp.stack([jnp.sum(x), jnp.sum(y), jnp.sum(x * x),
                      jnp.sum(y * y), jnp.sum(x * y), jnp.sum(d * d)])


@jax.jit
def ssim_loss(img1, img2):
    assert img1.shape == img2.shape
    n = img1.size

    x = img1.reshape(-1)
    y = img2.reshape(-1)

    lane_rem = n % _LANES
    n_main = n - lane_rem
    rows = n_main // _LANES

    if rows >= _SUBLANES:
        kernel_elems = n_main
    else:
        kernel_elems = 0  # tiny input: everything handled by plain jnp below

    if kernel_elems:
        if kernel_elems == n:
            xk, yk = x, y  # zero-copy path (n % 128 == 0: typical images)
        else:
            # TODO(synk): lane-unaligned n pays one slice copy for the aligned
            # prefix; an element-masked 1-D BlockSpec could avoid it but is
            # not worth the lowering risk for a <128-element remainder.
            xk, yk = x[:kernel_elems], y[:kernel_elems]
        stats = _run_stats_kernel(xk.reshape(rows, _LANES),
                                  yk.reshape(rows, _LANES))
    else:
        stats = jnp.zeros((_NSTATS,), jnp.float32)

    if kernel_elems < n:
        stats = stats + _tail_stats(x[kernel_elems:], y[kernel_elems:])

    sum_x, sum_y, sum_xx, sum_yy, sum_xy, sum_sq = (
        stats[k] for k in range(_NSTATS))

    nf = jnp.float32(n)
    mu_x = sum_x / nf
    mu_y = sum_y / nf
    # Direct sum((x-y)^2) accumulator -> no catastrophic cancellation.
    mse = sum_sq / nf
    # torch.var() default is unbiased (ddof=1). One-pass form is adequate for
    # normalized image data; a two-pass scheme would be needed for mean>>std.
    sigma_x = (sum_xx - nf * mu_x * mu_x) / (nf - 1.0)
    sigma_y = (sum_yy - nf * mu_y * mu_y) / (nf - 1.0)
    # ((x - mu_x)*(y - mu_y)).mean() == mean(x*y) - mu_x*mu_y   (ddof=0)
    sigma_xy = sum_xy / nf - mu_x * mu_y

    c1 = jnp.float32(0.01 ** 2)
    c2 = jnp.float32(0.03 ** 2)
    numerator = (2.0 * mu_x * mu_y + c1) * (2.0 * sigma_xy + c2)
    denominator = (mu_x * mu_x + mu_y * mu_y + c1) * (sigma_x + sigma_y + c2)
    ssim_val = numerator / denominator
    return 0.4 * mse + 0.6 * (1.0 - ssim_val)


def _ssim_loss_ref(img1, img2):
    """Pure-JAX reference mirroring the PyTorch module (for verification)."""
    x = img1.astype(jnp.float32)
    y = img2.astype(jnp.float32)
    mse = jnp.mean((x - y) ** 2)
    mu_x, mu_y = jnp.mean(x), jnp.mean(y)
    sigma_x = jnp.var(x, ddof=1)
    sigma_y = jnp.var(y, ddof=1)
    sigma_xy = jnp.mean((x - mu_x) * (y - mu_y))
    c1, c2 = 0.01 ** 2, 0.03 ** 2
    num = (2 * mu_x * mu_y + c1) * (2 * sigma_xy + c2)
    den = (mu_x ** 2 + mu_y ** 2 + c1) * (sigma_x + sigma_y + c2)
    ssim_val = num / den
    return 0.4 * mse + 0.6 * (1 - ssim_val)


if __name__ == "__main__":
    key = jax.random.PRNGKey(0)
    k1, k2 = jax.random.split(key)
    # NCHW like the PyTorch module's expected inputs.
    img1 = jax.random.uniform(k1, (2, 4, 16, 16), dtype=jnp.float32)
    img2 = jax.random.uniform(k2, (2, 4, 16, 16), dtype=jnp.float32)

    loss = jax.block_until_ready(ssim_loss(img1, img2))
    ref = jax.block_until_ready(_ssim_loss_ref(img1, img2))
    assert jnp.allclose(loss, ref, atol=1e-5, rtol=1e-5), (loss, ref)

    print("KERNEL_OK")
</pallas_src>

<mosaic_0001>
module attributes {stable_mosaic.version = 11 : i64} {
  func.func @_stats_kernel(%arg0: i32, %arg1: memref<16x128xf32, #tpu.memory_space<vmem>>, %arg2: memref<16x128xf32, #tpu.memory_space<vmem>>, %arg3: memref<1x6x8x128xf32, #tpu.memory_space<vmem>>) attributes {dimension_semantics = [#tpu.dimension_semantics<arbitrary>], iteration_bounds = array<i64: 1>, scalar_prefetch = 0 : i64, scratch_operands = 0 : i64, tpu.core_type = #tpu.core_type<tc>, window_params = [{transform_indices = @transform_0, window_bounds = array<i64: 16, 128>}, {transform_indices = @transform_1, window_bounds = array<i64: 16, 128>}, {pipeline_mode = #tpu.pipeline_mode<synchronous>, transform_indices = @transform_2, window_bounds = array<i64: 1, 6, 8, 128>}]} {
    %c0_i32 = arith.constant 0 : i32
    %0 = arith.cmpi eq, %arg0, %c0_i32 : i32
    %1 = arith.extui %0 : i1 to i32
    %c0_i32_0 = arith.constant 0 : i32
    %2 = arith.cmpi ne, %1, %c0_i32_0 : i32
    scf.if %2 {
      %cst_51 = arith.constant 0.000000e+00 : f32
      %76 = vector.broadcast %cst_51 : f32 to vector<1x6x8x128xf32>
      %c0_52 = arith.constant 0 : index
      %c0_53 = arith.constant 0 : index
      %c0_54 = arith.constant 0 : index
      %c0_55 = arith.constant 0 : index
      %77 = vector.load %arg3[%c0_52, %c0_53, %c0_54, %c0_55] : memref<1x6x8x128xf32, #tpu.memory_space<vmem>>, vector<1x6x8x128xf32>
      tpu.vector_store %arg3[%c0_52, %c0_53, %c0_54, %c0_55], %76 {strides = array<i32>} : memref<1x6x8x128xf32, #tpu.memory_space<vmem>>, vector<1x6x8x128xf32>,
    } else {
    }
    %cst = arith.constant 0.000000e+00 : f32
    %3 = vector.broadcast %cst : f32 to vector<8x128xf32>
    %c0_i32_1 = arith.constant 0 : i32
    %c8_i32 = arith.constant 8 : i32
    %4 = arith.muli %c0_i32_1, %c8_i32 : i32
    %c0_i32_2 = arith.constant 0 : i32
    %5 = arith.addi %c0_i32_2, %4 : i32
    %6 = tpu.assume_multiple %5, 8 : i32
    %7 = arith.index_cast %6 : i32 to index
    %c0 = arith.constant 0 : index
    %8 = vector.load %arg1[%7, %c0] : memref<16x128xf32, #tpu.memory_space<vmem>>, vector<8x128xf32>
    %9 = arith.index_cast %6 : i32 to index
    %c0_3 = arith.constant 0 : index
    %10 = vector.load %arg2[%9, %c0_3] : memref<16x128xf32, #tpu.memory_space<vmem>>, vector<8x128xf32>
    %11 = arith.subf %8, %10 : vector<8x128xf32>
    %12 = arith.addf %3, %8 : vector<8x128xf32>
    %13 = arith.addf %3, %10 : vector<8x128xf32>
    %14 = arith.mulf %8, %8 : vector<8x128xf32>
    %15 = arith.addf %3, %14 : vector<8x128xf32>
    %16 = arith.mulf %10, %10 : vector<8x128xf32>
    %17 = arith.addf %3, %16 : vector<8x128xf32>
    %18 = arith.mulf %8, %10 : vector<8x128xf32>
    %19 = arith.addf %3, %18 : vector<8x128xf32>
    %20 = arith.mulf %11, %11 : vector<8x128xf32>
    %21 = arith.addf %3, %20 : vector<8x128xf32>
    %c1_i32 = arith.constant 1 : i32
    %c8_i32_4 = arith.constant 8 : i32
    %22 = arith.muli %c1_i32, %c8_i32_4 : i32
    %c0_i32_5 = arith.constant 0 : i32
    %23 = arith.addi %c0_i32_5, %22 : i32
    %24 = tpu.assume_multiple %23, 8 : i32
    %25 = arith.index_cast %24 : i32 to index
    %c0_6 = arith.constant 0 : index
    %26 = vector.load %arg1[%25, %c0_6] : memref<16x128xf32, #tpu.memory_space<vmem>>, vector<8x128xf32>
    %27 = arith.index_cast %24 : i32 to index
    %c0_7 = arith.constant 0 : index
    %28 = vector.load %arg2[%27, %c0_7] : memref<16x128xf32, #tpu.memory_space<vmem>>, vector<8x128xf32>
    %29 = arith.subf %26, %28 : vector<8x128xf32>
    %30 = arith.addf %12, %26 : vector<8x128xf32>
    %31 = arith.addf %13, %28 : vector<8x128xf32>
    %32 = arith.mulf %26, %26 : vector<8x128xf32>
    %33 = arith.addf %15, %32 : vector<8x128xf32>
    %34 = arith.mulf %28, %28 : vector<8x128xf32>
    %35 = arith.addf %17, %34 : vector<8x128xf32>
    %36 = arith.mulf %26, %28 : vector<8x128xf32>
    %37 = arith.addf %19, %36 : vector<8x128xf32>
    %38 = arith.mulf %29, %29 : vector<8x128xf32>
    %39 = arith.addf %21, %38 : vector<8x128xf32>
    %c2_i32 = arith.constant 2 : i32
    %c0_8 = arith.constant 0 : index
    %c0_9 = arith.constant 0 : index
    %c0_10 = arith.constant 0 : index
    %c0_11 = arith.constant 0 : index
    %40 = vector.load %arg3[%c0_8, %c0_9, %c0_10, %c0_11] : memref<1x6x8x128xf32, #tpu.memory_space<vmem>>, vector<1x1x8x128xf32>
    %41 = vector.shape_cast %40 : vector<1x1x8x128xf32> to vector<8x128xf32>
    %42 = arith.addf %41, %30 : vector<8x128xf32>
    %c0_12 = arith.constant 0 : index
    %c0_13 = arith.constant 0 : index
    %c0_14 = arith.constant 0 : index
    %c0_15 = arith.constant 0 : index
    %43 = vector.load %arg3[%c0_12, %c0_13, %c0_14, %c0_15] : memref<1x6x8x128xf32, #tpu.memory_space<vmem>>, vector<1x1x8x128xf32>
    %44 = vector.shape_cast %43 : vector<1x1x8x128xf32> to vector<8x128xf32>
    %45 = vector.shape_cast %42 : vector<8x128xf32> to vector<1x1x8x128xf32>
    tpu.vector_store %arg3[%c0_12, %c0_13, %c0_14, %c0_15], %45 {strides = array<i32>} : memref<1x6x8x128xf32, #tpu.memory_space<vmem>>, vector<1x1x8x128xf32>,
    %c0_16 = arith.constant 0 : index
    %c1 = arith.constant 1 : index
    %c0_17 = arith.constant 0 : index
    %c0_18 = arith.constant 0 : index
    %46 = vector.load %arg3[%c0_16, %c1, %c0_17, %c0_18] : memref<1x6x8x128xf32, #tpu.memory_space<vmem>>, vector<1x1x8x128xf32>
    %47 = vector.shape_cast %46 : vector<1x1x8x128xf32> to vector<8x128xf32>
    %48 = arith.addf %47, %31 : vector<8x128xf32>
    %c0_19 = arith.constant 0 : index
    %c1_20 = arith.constant 1 : index
    %c0_21 = arith.constant 0 : index
    %c0_22 = arith.constant 0 : index
    %49 = vector.load %arg3[%c0_19, %c1_20, %c0_21, %c0_22] : memref<1x6x8x128xf32, #tpu.memory_space<vmem>>, vector<1x1x8x128xf32>
    %50 = vector.shape_cast %49 : vector<1x1x8x128xf32> to vector<8x128xf32>
    %51 = vector.shape_cast %48 : vector<8x128xf32> to vector<1x1x8x128xf32>
    tpu.vector_store %arg3[%c0_19, %c1_20, %c0_21, %c0_22], %51 {strides = array<i32>} : memref<1x6x8x128xf32, #tpu.memory_space<vmem>>, vector<1x1x8x128xf32>,
    %c0_23 = arith.constant 0 : index
    %c2 = arith.constant 2 : index
    %c0_24 = arith.constant 0 : index
    %c0_25 = arith.constant 0 : index
    %52 = vector.load %arg3[%c0_23, %c2, %c0_24, %c0_25] : memref<1x6x8x128xf32, #tpu.memory_space<vmem>>, vector<1x1x8x128xf32>
    %53 = vector.shape_cast %52 : vector<1x1x8x128xf32> to vector<8x128xf32>
    %54 = arith.addf %53, %33 : vector<8x128xf32>
    %c0_26 = arith.constant 0 : index
    %c2_27 = arith.constant 2 : index
    %c0_28 = arith.constant 0 : index
    %c0_29 = arith.constant 0 : index
    %55 = vector.load %arg3[%c0_26, %c2_27, %c0_28, %c0_29] : memref<1x6x8x128xf32, #tpu.memory_space<vmem>>, vector<1x1x8x128xf32>
    %56 = vector.shape_cast %55 : vector<1x1x8x128xf32> to vector<8x128xf32>
    %57 = vector.shape_cast %54 : vector<8x128xf32> to vector<1x1x8x128xf32>
    tpu.vector_store %arg3[%c0_26, %c2_27, %c0_28, %c0_29], %57 {strides = array<i32>} : memref<1x6x8x128xf32, #tpu.memory_space<vmem>>, vector<1x1x8x128xf32>,
    %c0_30 = arith.constant 0 : index
    %c3 = arith.constant 3 : index
    %c0_31 = arith.constant 0 : index
    %c0_32 = arith.constant 0 : index
    %58 = vector.load %arg3[%c0_30, %c3, %c0_31, %c0_32] : memref<1x6x8x128xf32, #tpu.memory_space<vmem>>, vector<1x1x8x128xf32>
    %59 = vector.shape_cast %58 : vector<1x1x8x128xf32> to vector<8x128xf32>
    %60 = arith.addf %59, %35 : vector<8x128xf32>
    %c0_33 = arith.constant 0 : index
    %c3_34 = arith.constant 3 : index
    %c0_35 = arith.constant 0 : index
    %c0_36 = arith.constant 0 : index
    %61 = vector.load %arg3[%c0_33, %c3_34, %c0_35, %c0_36] : memref<1x6x8x128xf32, #tpu.memory_space<vmem>>, vector<1x1x8x128xf32>
    %62 = vector.shape_cast %61 : vector<1x1x8x128xf32> to vector<8x128xf32>
    %63 = vector.shape_cast %60 : vector<8x128xf32> to vector<1x1x8x128xf32>
    tpu.vector_store %arg3[%c0_33, %c3_34, %c0_35, %c0_36], %63 {strides = array<i32>} : memref<1x6x8x128xf32, #tpu.memory_space<vmem>>, vector<1x1x8x128xf32>,
    %c0_37 = arith.constant 0 : index
    %c4 = arith.constant 4 : index
    %c0_38 = arith.constant 0 : index
    %c0_39 = arith.constant 0 : index
    %64 = vector.load %arg3[%c0_37, %c4, %c0_38, %c0_39] : memref<1x6x8x128xf32, #tpu.memory_space<vmem>>, vector<1x1x8x128xf32>
    %65 = vector.shape_cast %64 : vector<1x1x8x128xf32> to vector<8x128xf32>
    %66 = arith.addf %65, %37 : vector<8x128xf32>
    %c0_40 = arith.constant 0 : index
    %c4_41 = arith.constant 4 : index
    %c0_42 = arith.constant 0 : index
    %c0_43 = arith.constant 0 : index
    %67 = vector.load %arg3[%c0_40, %c4_41, %c0_42, %c0_43] : memref<1x6x8x128xf32, #tpu.memory_space<vmem>>, vector<1x1x8x128xf32>
    %68 = vector.shape_cast %67 : vector<1x1x8x128xf32> to vector<8x128xf32>
    %69 = vector.shape_cast %66 : vector<8x128xf32> to vector<1x1x8x128xf32>
    tpu.vector_store %arg3[%c0_40, %c4_41, %c0_42, %c0_43], %69 {strides = array<i32>} : memref<1x6x8x128xf32, #tpu.memory_space<vmem>>, vector<1x1x8x128xf32>,
    %c0_44 = arith.constant 0 : index
    %c5 = arith.constant 5 : index
    %c0_45 = arith.constant 0 : index
    %c0_46 = arith.constant 0 : index
    %70 = vector.load %arg3[%c0_44, %c5, %c0_45, %c0_46] : memref<1x6x8x128xf32, #tpu.memory_space<vmem>>, vector<1x1x8x128xf32>
    %71 = vector.shape_cast %70 : vector<1x1x8x128xf32> to vector<8x128xf32>
    %72 = arith.addf %71, %39 : vector<8x128xf32>
    %c0_47 = arith.constant 0 : index
    %c5_48 = arith.constant 5 : index
    %c0_49 = arith.constant 0 : index
    %c0_50 = arith.constant 0 : index
    %73 = vector.load %arg3[%c0_47, %c5_48, %c0_49, %c0_50] : memref<1x6x8x128xf32, #tpu.memory_space<vmem>>, vector<1x1x8x128xf32>
    %74 = vector.shape_cast %73 : vector<1x1x8x128xf32> to vector<8x128xf32>
    %75 = vector.shape_cast %72 : vector<8x128xf32> to vector<1x1x8x128xf32>
    tpu.vector_store %arg3[%c0_47, %c5_48, %c0_49, %c0_50], %75 {strides = array<i32>} : memref<1x6x8x128xf32, #tpu.memory_space<vmem>>, vector<1x1x8x128xf32>,
    return
  }
  func.func @transform_0(%arg0: i32) -> (i32, i32) {
    %c0_i32 = arith.constant 0 : i32
    %c0_i32_0 = arith.constant 0 : i32
    return %arg0, %c0_i32 : i32, i32
  }
  func.func @transform_1(%arg0: i32) -> (i32, i32) {
    %c0_i32 = arith.constant 0 : i32
    %c0_i32_0 = arith.constant 0 : i32
    return %arg0, %c0_i32 : i32, i32
  }
  func.func @transform_2(%arg0: i32) -> (i32, i32, i32, i32) {
    %c0_i32 = arith.constant 0 : i32
    %c0_i32_0 = arith.constant 0 : i32
    %c0_i32_1 = arith.constant 0 : i32
    %c0_i32_2 = arith.constant 0 : i32
    %c0_i32_3 = arith.constant 0 : i32
    return %c0_i32, %c0_i32_0, %c0_i32_1, %c0_i32_2 : i32, i32, i32, i32
  }
}

</mosaic_0001>

<llo_original>
// kernel: ssim_loss.1
$region0: #{ssim_loss.1}
  #allocation0 [shape = 'u32[]', space=smem, size = 0x4, offset = 0x4, fixed_abs, tag = 'smem constant byte address 0x4 - core index']
  #allocation1 [shape = 'u32[144,128]{1,0:T(1,128)}', space=vmem, size = 0x12000, scoped, tag = 'internal scratch']
  %s0 = inlined_call_operand.vmem [shape: f32[16,128], index: 0, kind: input, shape index: {}]
  %s1 = inlined_call_operand.vmem [shape: f32[16,128], index: 1, kind: input, shape index: {}]
  %s2 = inlined_call_operand.vmem [shape: f32[1,6,8,128], index: 2, kind: output, shape index: {}]
  %s3 = sld [smem:[#allocation0]]
  $region22: #{ssim_loss.1} parent=0
    _
  %s5 = ssub.s32 1, %s3
  %s6 = scalar_select 0, %s5, %s3
  // Predicated region
  $region2: #{ssim_loss.1} parent=0 // pred_check
    _
  $region3: #{ssim_loss.1} parent=0 // pred_check_branch
    %8 = sbr.rel (0) target = $region5
  $region4: #{ssim_loss.1} parent=0 // pred_region
    _
  $region5: #{ssim_loss.1} parent=0 // pred_fallthru
    _
  // Predicated region
  $region6: #{ssim_loss.1} parent=0 // pred_check
    _
  $region7: #{ssim_loss.1} parent=0 // pred_check_branch
    %10 = sbr.rel (0) target = $region9
  $region8: #{ssim_loss.1} parent=0 // pred_region
    _
  $region9: #{ssim_loss.1} parent=0 // pred_fallthru
    _
  %p11 = scmp.eq.s32.totalorder 0, 0
  // Predicated region
  $region10: #{ssim_loss.1} parent=0 // pred_check
    %p12 = pneg %p11
  $region11: #{ssim_loss.1} parent=0 // pred_check_branch
    %14 = sbr.rel (%p12) target = $region13
  $region12: #{ssim_loss.1} parent=0 // pred_region
    %15 = vst [vmem:[%s2] sm:$0xff] 0.0
    %16 = vst [vmem:[%s2 + $0x8] sm:$0xff] 0.0
    %17 = vst [vmem:[%s2 + $0x10] sm:$0xff] 0.0
    %18 = vst [vmem:[%s2 + $0x18] sm:$0xff] 0.0
    %19 = vst [vmem:[%s2 + $0x20] sm:$0xff] 0.0
    %20 = vst [vmem:[%s2 + $0x28] sm:$0xff] 0.0
  $region13: #{ssim_loss.1} parent=0 // pred_fallthru
    _
  %v21 = vld [vmem:[%s0] sm:$0xff]
  %v22 = vld [vmem:[%s1] sm:$0xff]
  %v23 = vsub.f32 %v21, %v22
  %v24 = vadd.f32 %v21, 0.0
  %v25 = vadd.f32 %v22, 0.0
  %v26 = vmul.f32 %v21, %v21
  %v27 = vadd.f32 %v26, 0.0
  %v28 = vmul.f32 %v22, %v22
  %v29 = vadd.f32 %v28, 0.0
  %v30 = vmul.f32 %v21, %v22
  %v31 = vadd.f32 %v30, 0.0
  %v32 = vmul.f32 %v23, %v23
  %v33 = vadd.f32 %v32, 0.0
  %s34 = scalar_lea.vmem %s0, 8
  %v35 = vld [vmem:[%s34] sm:$0xff]
  %s36 = scalar_lea.vmem %s1, 8
  %v37 = vld [vmem:[%s36] sm:$0xff]
  %v38 = vsub.f32 %v35, %v37
  %v39 = vadd.f32 %v24, %v35
  %v40 = vadd.f32 %v25, %v37
  %v41 = vmul.f32 %v35, %v35
  %v42 = vadd.f32 %v27, %v41
  %v43 = vmul.f32 %v37, %v37
  %v44 = vadd.f32 %v29, %v43
  %v45 = vmul.f32 %v35, %v37
  %v46 = vadd.f32 %v31, %v45
  %v47 = vmul.f32 %v38, %v38
  %v48 = vadd.f32 %v33, %v47
  %v49 = vld [vmem:[%s2] sm:$0xff]
  %v50 = vadd.f32 %v49, %v39
  %51 = vst [vmem:[%s2] sm:$0xff] %v50
  %s52 = scalar_lea.vmem %s2, 8
  %v53 = vld [vmem:[%s52] sm:$0xff]
  %v54 = vadd.f32 %v53, %v40
  %55 = vst [vmem:[%s52] sm:$0xff] %v54
  %s56 = scalar_lea.vmem %s2, 16
  %v57 = vld [vmem:[%s56] sm:$0xff]
  %v58 = vadd.f32 %v57, %v42
  %59 = vst [vmem:[%s56] sm:$0xff] %v58
  %s60 = scalar_lea.vmem %s2, 24
  %v61 = vld [vmem:[%s60] sm:$0xff]
  %v62 = vadd.f32 %v61, %v44
  %63 = vst [vmem:[%s60] sm:$0xff] %v62
  %s64 = scalar_lea.vmem %s2, 32
  %v65 = vld [vmem:[%s64] sm:$0xff]
  %v66 = vadd.f32 %v65, %v46
  %67 = vst [vmem:[%s64] sm:$0xff] %v66
  %s68 = scalar_lea.vmem %s2, 40
  %v69 = vld [vmem:[%s68] sm:$0xff]
  %v70 = vadd.f32 %v69, %v48
  %71 = vst [vmem:[%s68] sm:$0xff] %v70
  // Predicated region
  $region14: #{ssim_loss.1} parent=0 // pred_check
    _
  $region15: #{ssim_loss.1} parent=0 // pred_check_branch
    %73 = sbr.rel (0) target = $region17
  $region16: #{ssim_loss.1} parent=0 // pred_region
    _
  $region17: #{ssim_loss.1} parent=0 // pred_fallthru
    _
  // Predicated region
  $region18: #{ssim_loss.1} parent=0 // pred_check
    _
  $region19: #{ssim_loss.1} parent=0 // pred_check_branch
    %75 = sbr.rel (0) target = $region21
  $region20: #{ssim_loss.1} parent=0 // pred_region
    _
  $region21: #{ssim_loss.1} parent=0 // pred_fallthru
    _

</llo_original>
